<compile_context>
chip_gen: v7x
topology: tpu7x:2x2x1
jax: 0.10.0
libtpu: 0.0.40
codegen_flags: <defaults>
</compile_context>

<pallas_src>
import math
from functools import partial

import jax
import jax.numpy as jnp
from jax.experimental import pallas as pl
from jax.experimental.pallas import tpu as pltpu

_MIB = 1024 * 1024


def _qkv_attention_legacy_kernel(q_ref, k_ref, v_ref, o_ref, kt_ref, *,
                                 scale, valid_len, key_tile, approx_recip):
    """One (head-block, query-tile) grid step.

    q_ref : (hb, ch, q_tile)  current query tile (input dtype)
    k_ref : (hb, ch, t_pad)   all (padded) keys for this head block
    v_ref : (hb, ch, t_pad)   all (padded) values for this head block
    o_ref : (hb, ch, q_tile)  output tile
    kt_ref: (hb, t_pad, ch)   VMEM scratch holding k^T (hoisted per head block)
    """
    hb, ch, q_tile = q_ref.shape
    t_pad = k_ref.shape[2]
    nk = t_pad // key_tile
    needs_mask = valid_len < t_pad

    # Hoist k^T once per head block (query tile 0); reused by every query tile.
    @pl.when(pl.program_id(1) == 0)
    def _():
        kt_ref[...] = jnp.swapaxes(k_ref[...], 1, 2)

    # Both 1/ch**0.25 scales folded into one multiply on q (input dtype).
    q = q_ref[...] * jnp.asarray(scale, dtype=q_ref.dtype)

    def key_major_logits(start, size):
        # w[b, s, t] = sum_c k[b, c, s] * q[b, c, t]   (key-major, f32 on MXU)
        kc = kt_ref[:, pl.ds(start, size), :]                      # (hb, size, ch)
        w = jax.lax.dot_general(
            kc, q, dimension_numbers=(((2,), (1,)), ((0,), (0,))),
            preferred_element_type=jnp.float32)                    # (hb, size, Tq)
        if needs_mask:
            key_idx = start + jax.lax.broadcasted_iota(jnp.int32, (1, size, 1), 1)
            w = jnp.where(key_idx < valid_len, w, -jnp.inf)
        return w

    def pv_matmul(p, start, size):
        # acc[b, c, t] = sum_s v[b, c, s] * p[b, s, t]   (f32 on MXU)
        vc = v_ref[:, :, pl.ds(start, size)]                       # (hb, ch, size)
        return jax.lax.dot_general(
            vc, p.astype(vc.dtype),
            dimension_numbers=(((2,), (1,)), ((0,), (0,))),
            preferred_element_type=jnp.float32)                    # (hb, ch, Tq)

    if nk == 1:
        # Short/medium sequences: single key chunk, deferred normalization.
        w = key_major_logits(0, t_pad)
        m = jnp.max(w, axis=1, keepdims=True)                      # (hb, 1, Tq)
        p = jnp.exp(w - m)
        l = jnp.sum(p, axis=1, keepdims=True)                      # (hb, 1, Tq)
        acc = pv_matmul(p, 0, t_pad)                               # (hb, ch, Tq)
    else:
        # Flash pattern: online softmax over key tiles; the full [T, Tq]
        # weight matrix is never materialized.
        def body(s, carry):
            m, l, acc = carry
            start = pl.multiple_of(s * key_tile, key_tile)
            w = key_major_logits(start, key_tile)                  # (hb, kt, Tq)
            m_new = jnp.maximum(m, jnp.max(w, axis=1, keepdims=True))
            alpha = jnp.exp(m - m_new)
            p = jnp.exp(w - m_new)
            l = alpha * l + jnp.sum(p, axis=1, keepdims=True)
            acc = alpha * acc + pv_matmul(p, start, key_tile)
            return m_new, l, acc

        init = (jnp.full((hb, 1, q_tile), -jnp.inf, dtype=jnp.float32),
                jnp.zeros((hb, 1, q_tile), dtype=jnp.float32),
                jnp.zeros((hb, ch, q_tile), dtype=jnp.float32))
        _, l, acc = jax.lax.fori_loop(0, nk, body, init)

    # Deferred softmax normalization on the small (hb, ch, Tq) accumulator.
    if approx_recip:
        # EUP reciprocal: error well below bf16/f16 rounding of the output.
        out = acc * pl.reciprocal(l, approx=True)
    else:
        out = acc / l
    o_ref[...] = out.astype(o_ref.dtype)


def _round_up(x, m):
    return -(-x // m) * m


def _kv_block_spec(block_shape, index_map, buffer_count):
    """BlockSpec with optional >2-deep buffering for the k/v blocks (their
    refill DMA at head-block boundaries has only one q-tile of compute to hide
    behind).  Falls back to a plain double-buffered spec if unsupported."""
    if buffer_count > 2 and hasattr(pl, "Buffered"):
        try:
            return pl.BlockSpec(block_shape, index_map,
                                pipeline_mode=pl.Buffered(buffer_count))
        except TypeError:  # pipeline_mode not available on this jax version
            pass
    return pl.BlockSpec(block_shape, index_map)


def qkv_attention_legacy(qkv: jax.Array, n_heads: int, *,
                         q_tile: int | None = None,
                         key_tile: int | None = None,
                         heads_per_block: int | None = None,
                         kv_buffers: int | None = None,
                         min_seq_len_for_flash: int = 1024,
                         vmem_budget_bytes: int | None = None) -> jax.Array:
    """qkv: [N, H*3*C, T] -> [N, H*C, T]  (QKVAttentionLegacy.forward)."""
    bs, width, length = qkv.shape
    assert width % (3 * n_heads) == 0
    ch = width // (3 * n_heads)
    bh = bs * n_heads
    dtype = qkv.dtype
    itemsize = jnp.dtype(dtype).itemsize
    # (1/ch**0.25)**2 folded into q; equivalent (not bit-exact) to scaling q
    # and k separately as torch does.
    scale = 1.0 / math.sqrt(ch)

    # Pad T to a multiple of 128 -> lane-dense loads/stores; padded keys are
    # masked to -inf inside the kernel, padded queries sliced off below.
    t_pad = _round_up(length, 128)
    x = qkv.reshape(bh, 3, ch, length)          # legacy split order: [q; k; v]
    if t_pad != length:
        x = jnp.pad(x, ((0, 0), (0, 0), (0, 0), (0, t_pad - length)))

    # Query tile (lane-aligned; prefer 256 over 128 when it divides T).
    if q_tile is None:
        if t_pad <= 512:
            q_tile = t_pad
        elif t_pad % 256 == 0:
            q_tile = 256
        else:
            q_tile = 128
    assert t_pad % q_tile == 0 and (q_tile == t_pad or q_tile % 128 == 0)
    nq = t_pad // q_tile

    # Key tile: online-softmax (flash) loop for long sequences.
    def _pick_key_tile():
        for cand in (512, 256, 128):
            if t_pad % cand == 0 and t_pad // cand >= 2:
                return cand
        return t_pad

    user_key_tile = key_tile
    if key_tile is None:
        if t_pad >= max(min_seq_len_for_flash, 256):
            key_tile = _pick_key_tile()
        else:
            key_tile = t_pad
    else:
        assert t_pad % key_tile == 0 and (key_tile == t_pad or key_tile % 128 == 0)

    # Deeper k/v buffering only pays off when there are enough query tiles to
    # hide the head-block-boundary refill DMA behind.
    if kv_buffers is None:
        kv_buffers = 3 if nq >= 4 else 2

    # Generation-aware VMEM budget (v5e/v6e: 128 MiB physical, v7x: 64 MiB).
    try:
        vmem_cap = int(getattr(pltpu.get_tpu_info(), "vmem_capacity_bytes",
                               128 * _MIB))
    except Exception:
        vmem_cap = 128 * _MIB
    if vmem_budget_bytes is None:
        vmem_budget_bytes = 48 * _MIB if vmem_cap >= 96 * _MIB else 28 * _MIB

    sub = 8 if itemsize >= 4 else (16 if itemsize == 2 else 32)

    def _vmem_estimate(hpb_c, kt):
        ch_s = _round_up(ch, sub)            # sublane-padded channel dim
        ch_l = _round_up(ch, 128)            # lane-padded channel dim (k^T scratch)
        q_blk = 2 * hpb_c * ch_s * q_tile * itemsize
        kv_blk = 2 * kv_buffers * hpb_c * ch_s * t_pad * itemsize
        o_blk = 2 * hpb_c * ch_s * q_tile * itemsize
        kt_scr = hpb_c * t_pad * ch_l * itemsize
        w_buf = hpb_c * kt * q_tile * (4 + itemsize)    # f32 logits + cast weights
        acc = hpb_c * ch_s * q_tile * 4
        misc = hpb_c * 64 * q_tile * 4
        return q_blk + kv_blk + o_blk + kt_scr + w_buf + acc + misc

    divisors = [d for d in range(1, bh + 1) if bh % d == 0]
    if heads_per_block is None:
        fitting = [d for d in divisors
                   if _vmem_estimate(d, key_tile) <= vmem_budget_bytes]
        if not fitting and user_key_tile is None and key_tile == t_pad:
            # Nothing fits: route to the key-tiled (flash) path before giving up.
            key_tile = _pick_key_tile()
            fitting = [d for d in divisors
                       if _vmem_estimate(d, key_tile) <= vmem_budget_bytes]
        if not fitting or bh == 1:
            heads_per_block = 1
        else:
            multi = [d for d in fitting if bh // d >= 2] or fitting
            even = [d for d in multi if (bh // d) % 2 == 0]   # v7x: 2 TensorCores
            heads_per_block = max(even or multi)
    assert bh % heads_per_block == 0
    hpb = heads_per_block

    # Explicit scoped-VMEM limit: budget + headroom, raised further if even the
    # chosen configuration exceeds it (capped just below physical VMEM).
    need = _vmem_estimate(hpb, key_tile)
    vmem_limit = int(min(max(vmem_budget_bytes, need) + 8 * _MIB,
                         max(vmem_cap - 4 * _MIB, 16 * _MIB)))

    kernel = partial(_qkv_attention_legacy_kernel,
                     scale=scale, valid_len=length, key_tile=key_tile,
                     approx_recip=(itemsize < 4))

    cost = pl.CostEstimate(
        flops=4 * bh * ch * t_pad * t_pad,
        transcendentals=bh * t_pad * t_pad,
        bytes_accessed=4 * bh * ch * t_pad * itemsize)

    out = pl.pallas_call(
        kernel,
        out_shape=jax.ShapeDtypeStruct((bh, ch, t_pad), dtype),
        grid=(bh // hpb, nq),
        in_specs=[
            # q: only the current query tile is resident.
            pl.BlockSpec((hpb, None, ch, q_tile), lambda i, j: (i, 0, 0, j)),
            # k / v: full (padded) key axis, constant across query tiles.
            _kv_block_spec((hpb, None, ch, t_pad), lambda i, j: (i, 1, 0, 0),
                           kv_buffers),
            _kv_block_spec((hpb, None, ch, t_pad), lambda i, j: (i, 2, 0, 0),
                           kv_buffers),
        ],
        out_specs=pl.BlockSpec((hpb, ch, q_tile), lambda i, j: (i, 0, j)),
        scratch_shapes=[pltpu.VMEM((hpb, t_pad, ch), dtype)],   # hoisted k^T
        compiler_params=pltpu.CompilerParams(
            dimension_semantics=("parallel", "arbitrary"),
            vmem_limit_bytes=vmem_limit),
        cost_estimate=cost,
    )(x, x, x)

    out = out.reshape(bs, n_heads * ch, t_pad)
    if t_pad != length:
        out = out[:, :, :length]
    return out


def qkv_attention_legacy_ref(qkv: jax.Array, n_heads: int) -> jax.Array:
    """Pure-JAX reference mirroring QKVAttentionLegacy.forward exactly."""
    bs, width, length = qkv.shape
    ch = width // (3 * n_heads)
    x = qkv.reshape(bs * n_heads, 3 * ch, length)
    q, k, v = x[:, :ch, :], x[:, ch:2 * ch, :], x[:, 2 * ch:, :]
    scale = 1.0 / math.sqrt(math.sqrt(ch))
    w = jnp.einsum('bct,bcs->bts', q * scale, k * scale,
                   precision=jax.lax.Precision.HIGHEST)
    w = jax.nn.softmax(w.astype(jnp.float32), axis=-1).astype(w.dtype)
    a = jnp.einsum('bts,bcs->bct', w, v, precision=jax.lax.Precision.HIGHEST)
    return a.reshape(bs, -1, length)


def _check(qkv, n_heads, atol, rtol, **kw):
    out = jax.block_until_ready(qkv_attention_legacy(qkv, n_heads, **kw))
    ref = qkv_attention_legacy_ref(qkv, n_heads)
    assert out.shape == ref.shape
    o32 = out.astype(jnp.float32)
    r32 = ref.astype(jnp.float32)
    assert jnp.allclose(o32, r32, atol=atol, rtol=rtol), (
        f"mismatch: max abs err = {jnp.max(jnp.abs(o32 - r32))}")
    return out


if __name__ == "__main__":
    root = jax.random.PRNGKey(0)
    k1, k2, k3 = jax.random.split(root, 3)

    # 1) Small shapes consistent with the module: N=2, H=2, C=8, T=16.
    #    (T is padded to 128 in the wrapper -> exercises the key-mask path.)
    N, H, C, T = 2, 2, 8, 16
    qkv1 = jax.random.normal(k1, (N, 3 * H * C, T), dtype=jnp.float32)
    _check(qkv1, H, atol=2e-3, rtol=2e-3)

    # 2) Ragged T (320 -> padded 384), multi-query-tile grid (hoisted k^T
    #    reused across tiles) and the flash/online-softmax key-tile loop.
    N, H, C, T = 1, 4, 32, 320
    qkv2 = jax.random.normal(k2, (N, 3 * H * C, T), dtype=jnp.float32)
    _check(qkv2, H, atol=2e-3, rtol=2e-3, q_tile=128, min_seq_len_for_flash=256)

    # 3) bf16 path (approx EUP reciprocal, low-precision weight cast).
    N, H, C, T = 2, 2, 16, 128
    qkv3 = jax.random.normal(k3, (N, 3 * H * C, T), dtype=jnp.bfloat16)
    _check(qkv3, H, atol=5e-2, rtol=5e-2)

    print("KERNEL_OK")
</pallas_src>

<mosaic_0001>
module attributes {stable_mosaic.version = 11 : i64} {
  func.func @_qkv_attention_legacy_kernel(%arg0: i32, %arg1: i32, %arg2: memref<2x1x8x128xf32, #tpu.memory_space<vmem>>, %arg3: memref<2x1x8x128xf32, #tpu.memory_space<vmem>>, %arg4: memref<2x1x8x128xf32, #tpu.memory_space<vmem>>, %arg5: memref<2x8x128xf32, #tpu.memory_space<vmem>>, %arg6: memref<2x128x8xf32, #tpu.memory_space<vmem>>) attributes {dimension_semantics = [#tpu.dimension_semantics<parallel>, #tpu.dimension_semantics<arbitrary>], iteration_bounds = array<i64: 2, 1>, scalar_prefetch = 0 : i64, scratch_operands = 1 : i64, tpu.core_type = #tpu.core_type<tc>, window_params = [{transform_indices = @transform_0, window_bounds = array<i64: 2, 1, 8, 128>}, {transform_indices = @transform_1, window_bounds = array<i64: 2, 1, 8, 128>}, {transform_indices = @transform_2, window_bounds = array<i64: 2, 1, 8, 128>}, {transform_indices = @transform_3, window_bounds = array<i64: 2, 8, 128>}]} {
    %c0_i32 = arith.constant 0 : i32
    %0 = arith.cmpi eq, %arg1, %c0_i32 : i32
    %1 = arith.extui %0 : i1 to i32
    %c0_i32_0 = arith.constant 0 : i32
    %2 = arith.cmpi ne, %1, %c0_i32_0 : i32
    scf.if %2 {
      %c0_20 = arith.constant 0 : index
      %c0_21 = arith.constant 0 : index
      %c0_22 = arith.constant 0 : index
      %c0_23 = arith.constant 0 : index
      %31 = vector.load %arg3[%c0_20, %c0_21, %c0_22, %c0_23] : memref<2x1x8x128xf32, #tpu.memory_space<vmem>>, vector<2x1x8x128xf32>
      %32 = vector.shape_cast %31 : vector<2x1x8x128xf32> to vector<2x8x128xf32>
      %33 = tpu.transpose %32, [0, 2, 1] : vector<2x8x128xf32> -> vector<2x128x8xf32>
      %c0_24 = arith.constant 0 : index
      %c0_25 = arith.constant 0 : index
      %c0_26 = arith.constant 0 : index
      %34 = vector.load %arg6[%c0_24, %c0_25, %c0_26] : memref<2x128x8xf32, #tpu.memory_space<vmem>>, vector<2x128x8xf32>
      tpu.vector_store %arg6[%c0_24, %c0_25, %c0_26], %33 {strides = array<i32>} : memref<2x128x8xf32, #tpu.memory_space<vmem>>, vector<2x128x8xf32>,
    } else {
    }
    %c0 = arith.constant 0 : index
    %c0_1 = arith.constant 0 : index
    %c0_2 = arith.constant 0 : index
    %c0_3 = arith.constant 0 : index
    %3 = vector.load %arg2[%c0, %c0_1, %c0_2, %c0_3] : memref<2x1x8x128xf32, #tpu.memory_space<vmem>>, vector<2x1x8x128xf32>
    %4 = vector.shape_cast %3 : vector<2x1x8x128xf32> to vector<2x8x128xf32>
    %cst = arith.constant 0.353553385 : f32
    %5 = vector.broadcast %cst : f32 to vector<2x8x128xf32>
    %6 = arith.mulf %4, %5 : vector<2x8x128xf32>
    %c0_4 = arith.constant 0 : index
    %c0_5 = arith.constant 0 : index
    %c0_6 = arith.constant 0 : index
    %7 = vector.load %arg6[%c0_4, %c0_5, %c0_6] : memref<2x128x8xf32, #tpu.memory_space<vmem>>, vector<2x128x8xf32>
    %cst_7 = arith.constant dense<0.000000e+00> : vector<2x128x128xf32>
    %8 = tpu.matmul %7, %6, %cst_7 {dimension_numbers = #tpu.dot_dimension_numbers<[2], [1], [1], [2], [0, 0, 0, 1, 1, 2], [0], [0]>} : vector<2x128x8xf32>, vector<2x8x128xf32>, vector<2x128x128xf32> -> vector<2x128x128xf32>
    %9 = tpu.iota {dimensions = array<i32: 1>} : vector<1x128x1xi32>
    %c0_i32_8 = arith.constant 0 : i32
    %10 = vector.broadcast %c0_i32_8 : i32 to vector<1x128x1xi32>
    %11 = arith.addi %10, %9 : vector<1x128x1xi32>
    %c16_i32 = arith.constant 16 : i32
    %12 = vector.broadcast %c16_i32 : i32 to vector<1x128x1xi32>
    %13 = arith.cmpi slt, %11, %12 : vector<1x128x1xi32>
    %cst_9 = arith.constant 0xFF800000 : f32
    %14 = vector.shape_cast %13 : vector<1x128x1xi1> to vector<1x128x1xi1>
    %15 = vector.broadcast %14 : vector<1x128x1xi1> to vector<2x128x128xi1>
    %16 = vector.broadcast %cst_9 : f32 to vector<2x128x128xf32>
    %17 = arith.select %15, %8, %16 : vector<2x128x128xi1>, vector<2x128x128xf32>
    %cst_10 = arith.constant dense<0xFF800000> : vector<2x128xf32>
    %18 = vector.multi_reduction <maximumf>, %17, %cst_10 [1] : vector<2x128x128xf32> to vector<2x128xf32>
    %19 = vector.shape_cast %18 : vector<2x128xf32> to vector<2x1x128xf32>
    %20 = vector.broadcast %19 : vector<2x1x128xf32> to vector<2x128x128xf32>
    %21 = arith.subf %17, %20 : vector<2x128x128xf32>
    %22 = math.exp %21 : vector<2x128x128xf32>
    %cst_11 = arith.constant dense<0.000000e+00> : vector<2x128xf32>
    %23 = vector.multi_reduction <add>, %22, %cst_11 [1] : vector<2x128x128xf32> to vector<2x128xf32>
    %24 = vector.shape_cast %23 : vector<2x128xf32> to vector<2x1x128xf32>
    %c0_12 = arith.constant 0 : index
    %c0_13 = arith.constant 0 : index
    %c0_14 = arith.constant 0 : index
    %c0_15 = arith.constant 0 : index
    %25 = vector.load %arg4[%c0_12, %c0_13, %c0_14, %c0_15] : memref<2x1x8x128xf32, #tpu.memory_space<vmem>>, vector<2x1x8x128xf32>
    %26 = vector.shape_cast %25 : vector<2x1x8x128xf32> to vector<2x8x128xf32>
    %cst_16 = arith.constant dense<0.000000e+00> : vector<2x8x128xf32>
    %27 = tpu.matmul %26, %22, %cst_16 {dimension_numbers = #tpu.dot_dimension_numbers<[2], [1], [1], [2], [0, 0, 0, 1, 1, 2], [0], [0]>} : vector<2x8x128xf32>, vector<2x128x128xf32>, vector<2x8x128xf32> -> vector<2x8x128xf32>
    %28 = vector.broadcast %24 : vector<2x1x128xf32> to vector<2x8x128xf32>
    %29 = arith.divf %27, %28 : vector<2x8x128xf32>
    %c0_17 = arith.constant 0 : index
    %c0_18 = arith.constant 0 : index
    %c0_19 = arith.constant 0 : index
    %30 = vector.load %arg5[%c0_17, %c0_18, %c0_19] : memref<2x8x128xf32, #tpu.memory_space<vmem>>, vector<2x8x128xf32>
    tpu.vector_store %arg5[%c0_17, %c0_18, %c0_19], %29 {strides = array<i32>} : memref<2x8x128xf32, #tpu.memory_space<vmem>>, vector<2x8x128xf32>,
    return
  }
  func.func @transform_0(%arg0: i32, %arg1: i32) -> (i32, i32, i32, i32) {
    %c0_i32 = arith.constant 0 : i32
    %c0_i32_0 = arith.constant 0 : i32
    %c0_i32_1 = arith.constant 0 : i32
    return %arg0, %c0_i32, %c0_i32_0, %arg1 : i32, i32, i32, i32
  }
  func.func @transform_1(%arg0: i32, %arg1: i32) -> (i32, i32, i32, i32) {
    %c1_i32 = arith.constant 1 : i32
    %c0_i32 = arith.constant 0 : i32
    %c0_i32_0 = arith.constant 0 : i32
    %c0_i32_1 = arith.constant 0 : i32
    return %arg0, %c1_i32, %c0_i32, %c0_i32_0 : i32, i32, i32, i32
  }
  func.func @transform_2(%arg0: i32, %arg1: i32) -> (i32, i32, i32, i32) {
    %c2_i32 = arith.constant 2 : i32
    %c0_i32 = arith.constant 0 : i32
    %c0_i32_0 = arith.constant 0 : i32
    %c0_i32_1 = arith.constant 0 : i32
    return %arg0, %c2_i32, %c0_i32, %c0_i32_0 : i32, i32, i32, i32
  }
  func.func @transform_3(%arg0: i32, %arg1: i32) -> (i32, i32, i32) {
    %c0_i32 = arith.constant 0 : i32
    %c0_i32_0 = arith.constant 0 : i32
    return %arg0, %c0_i32, %arg1 : i32, i32, i32
  }
}

</mosaic_0001>

<llo_original>
// kernel: tpu_custom_call.1
$region0: #{tpu_custom_call.1}
  #allocation0 [shape = 'u32[]', space=smem, size = 0x4, offset = 0x4, fixed_abs, tag = 'smem constant byte address 0x4 - core index']
  #allocation1 [shape = 'u32[144,128]{1,0:T(1,128)}', space=vmem, size = 0x12000, scoped, tag = 'internal scratch']
  #allocation2 [shape = 'f32[2,128,8]{2,1,0:T(8,128)}', space=vmem, size = 0x20000, scoped, tag = 'scratch operand']
  %s0 = inlined_call_operand.hbm [shape: f32[4,3,8,128], index: 0, kind: input, shape index: {}]
  %s1 = inlined_call_operand.hbm [shape: f32[4,3,8,128], index: 1, kind: input, shape index: {}]
  %s2 = inlined_call_operand.hbm [shape: f32[4,3,8,128], index: 2, kind: input, shape index: {}]
  %s3 = inlined_call_operand.hbm [shape: f32[4,8,128], index: 3, kind: output, shape index: {}]
  %s4 = sld [smem:[#allocation0]]
  $region61: #{tpu_custom_call.1} parent=0
    _
  %s6 = ssub.s32 1, %s4
  %s7 = scalar_select 0, %s6, %s4
  $region1: #{tpu_custom_call.1} parent=0
    #allocation3 [shape = 'u8[16384]{0}', space=vmem, size = 0x4000, scoped, tag = 'input window, operand 0']
    #allocation4 [shape = 's32[2]{0}', space=sflag, size = 0x8, scoped, tag = 'scoped memory for tpu_custom_call.1']
    #allocation5 [shape = 's32[2]{0}', space=sflag, size = 0x8, scoped, tag = 'scoped memory for tpu_custom_call.1']
    #allocation6 [shape = 'u8[16384]{0}', space=vmem, size = 0x4000, scoped, tag = 'input window, operand 1']
    #allocation7 [shape = 's32[2]{0}', space=sflag, size = 0x8, scoped, tag = 'scoped memory for tpu_custom_call.1']
    #allocation8 [shape = 'u8[16384]{0}', space=vmem, size = 0x4000, scoped, tag = 'input window, operand 2']
    #allocation9 [shape = 'u8[16384]{0}', space=vmem, size = 0x4000, scoped, tag = 'output window, operand 0']
    %8 = vsyncpa [#allocation4], 0
    %s9 = scalar_lea.sflag [#allocation4], 1
    %10 = vsyncpa %s9, 0
    %11 = vsyncpa [#allocation7], 0
    %s12 = scalar_lea.sflag [#allocation7], 1
    %13 = vsyncpa %s12, 0
    %14 = vsyncpa [#allocation5], 0
    %s15 = scalar_lea.sflag [#allocation5], 1
    %16 = vsyncpa %s15, 0
    loop: start=0, step=1, limit=4
    $region2: #{tpu_custom_call.1} parent=1 // loop_pre_header
      _
    $region3: #{tpu_custom_call.1} parent=1 // loop_header
      %s18 = sphi 0, %s22
      %p19 = scmp.ge.s32.totalorder %s18, 4
      %s25 = sphi 0, %s37
      %s26 = sphi 0, %s33
      %s27 = sphi 0, %s25
      %s28 = sphi 0, %s26
      %s29 = sphi 0, %s27
      %s30 = sphi 0, %s28
      %s42 = sphi 0, %s44
      %s45 = sphi 0, %s42
      %s46 = sphi 0, %s45
      %s62 = sphi 0, %s46
      %s68 = sphi 0, %s70
      %s71 = sphi 0, %s68
      %s72 = sphi 0, %s71
      %s88 = sphi 0, %s72
      %s94 = sphi 0, %s96
      %s97 = sphi 0, %s94
      %s98 = sphi 0, %s97
      %s114 = sphi 0, %s98
      %s122 = sphi 0, %s124
      %s125 = sphi 0, %s122
      %s126 = sphi 0, %s125
      %s142 = sphi 0, %s126
    $region4: #{tpu_custom_call.1} parent=1 // loop_header_branch
      %21 = sbr.rel (%p19) target = $region8
    $region5: #{tpu_custom_call.1} parent=1 // loop_body
      %s23 = ssub.s32 %s18, 1
      %s24 = ssub.s32 %s18, 2
      %s31 = sadd.s32 1, %s26
      %p32 = scmp.ge.s32.totalorder %s31, 1
      %s33 = scalar_select %p32, 0, %s31
      %s34 = sadd.s32 1, %s25
      %s35 = scalar_select %p32, %s34, %s25
      %p36 = scmp.ge.s32.totalorder %s35, 2
      %s37 = scalar_select %p36, 0, %s35
      %s38 = ssub.s32 %s25, %s37
      %s39 = ssub.s32 %s26, %s33
      %s40 = sor.u32 %s38, %s39
      %p41 = scmp.eq.s32.totalorder %s40, 0
      %s43 = sadd.s32 %s42, 1
      %s44 = scalar_select %p41, %s42, %s43
      %p47 = pneg %p41
      %p48 = scmp.eq.s32.totalorder %s18, 1
      %p49 = por %p47, %p48
      %p50 = scmp.ne.s32.totalorder %s42, %s45
      %p51 = scmp.eq.s32.totalorder %s18, 0
      %p52 = por %p50, %p51
      %p53 = scmp.ne.s32.totalorder %s42, %s45
      %p54 = scmp.eq.s32.totalorder %s23, 1
      %p55 = por %p53, %p54
      %p56 = scmp.ne.s32.totalorder %s45, %s46
      %p57 = scmp.eq.s32.totalorder %s23, 0
      %p58 = por %p56, %p57
      %p59 = scmp.ne.s32.totalorder %s45, %s46
      %p60 = scmp.eq.s32.totalorder %s24, 1
      %p61 = por %p59, %p60
      %p63 = scmp.ne.s32.totalorder %s46, %s62
      %p64 = scmp.eq.s32.totalorder %s24, 0
      %p65 = por %p63, %p64
      %s66 = ssub.s32 %s25, %s37
      %p67 = scmp.eq.s32.totalorder %s66, 0
      %s69 = sadd.s32 %s68, 1
      %s70 = scalar_select %p67, %s68, %s69
      %p73 = pneg %p67
      %p74 = scmp.eq.s32.totalorder %s18, 1
      %p75 = por %p73, %p74
      %p76 = scmp.ne.s32.totalorder %s68, %s71
      %p77 = scmp.eq.s32.totalorder %s18, 0
      %p78 = por %p76, %p77
      %p79 = scmp.ne.s32.totalorder %s68, %s71
      %p80 = scmp.eq.s32.totalorder %s23, 1
      %p81 = por %p79, %p80
      %p82 = scmp.ne.s32.totalorder %s71, %s72
      %p83 = scmp.eq.s32.totalorder %s23, 0
      %p84 = por %p82, %p83
      %p85 = scmp.ne.s32.totalorder %s71, %s72
      %p86 = scmp.eq.s32.totalorder %s24, 1
      %p87 = por %p85, %p86
      %p89 = scmp.ne.s32.totalorder %s72, %s88
      %p90 = scmp.eq.s32.totalorder %s24, 0
      %p91 = por %p89, %p90
      %s92 = ssub.s32 %s25, %s37
      %p93 = scmp.eq.s32.totalorder %s92, 0
      %s95 = sadd.s32 %s94, 1
      %s96 = scalar_select %p93, %s94, %s95
      %p99 = pneg %p93
      %p100 = scmp.eq.s32.totalorder %s18, 1
      %p101 = por %p99, %p100
      %p102 = scmp.ne.s32.totalorder %s94, %s97
      %p103 = scmp.eq.s32.totalorder %s18, 0
      %p104 = por %p102, %p103
      %p105 = scmp.ne.s32.totalorder %s94, %s97
      %p106 = scmp.eq.s32.totalorder %s23, 1
      %p107 = por %p105, %p106
      %p108 = scmp.ne.s32.totalorder %s97, %s98
      %p109 = scmp.eq.s32.totalorder %s23, 0
      %p110 = por %p108, %p109
      %p111 = scmp.ne.s32.totalorder %s97, %s98
      %p112 = scmp.eq.s32.totalorder %s24, 1
      %p113 = por %p111, %p112
      %p115 = scmp.ne.s32.totalorder %s98, %s114
      %p116 = scmp.eq.s32.totalorder %s24, 0
      %p117 = por %p115, %p116
      %s118 = ssub.s32 %s25, %s37
      %s119 = ssub.s32 %s26, %s33
      %s120 = sor.u32 %s118, %s119
      %p121 = scmp.eq.s32.totalorder %s120, 0
      %s123 = sadd.s32 %s122, 1
      %s124 = scalar_select %p121, %s122, %s123
      %p127 = pneg %p121
      %p128 = scmp.eq.s32.totalorder %s18, 1
      %p129 = por %p127, %p128
      %p130 = scmp.ne.s32.totalorder %s122, %s125
      %p131 = scmp.eq.s32.totalorder %s18, 0
      %p132 = por %p130, %p131
      %p133 = scmp.ne.s32.totalorder %s122, %s125
      %p134 = scmp.eq.s32.totalorder %s23, 1
      %p135 = por %p133, %p134
      %p136 = scmp.ne.s32.totalorder %s125, %s126
      %p137 = scmp.eq.s32.totalorder %s23, 0
      %p138 = por %p136, %p137
      %p139 = scmp.ne.s32.totalorder %s125, %s126
      %p140 = scmp.eq.s32.totalorder %s24, 1
      %p141 = por %p139, %p140
      %p143 = scmp.ne.s32.totalorder %s126, %s142
      %p144 = scmp.eq.s32.totalorder %s24, 0
      %p145 = por %p143, %p144
      %p146 = scmp.le.s32.totalorder 1, %s18
      %p147 = scmp.lt.s32.totalorder %s18, 3
      %p148 = pnand %p146, %p147
      %p149 = pneg %p148
      // Predicated region
      $region9: #{tpu_custom_call.1} parent=5 // pred_check
        _
      $region10: #{tpu_custom_call.1} parent=5 // pred_check_branch
        %151 = sbr.rel (%p148) target = $region12
      $region11: #{tpu_custom_call.1} parent=5 // pred_region
        %s152 = ssub.s32 %s18, 1
      $region12: #{tpu_custom_call.1} parent=5 // pred_fallthru
        _
      %p153 = scmp.lt.s32.totalorder %s18, 2
      // Predicated region
      $region13: #{tpu_custom_call.1} parent=5 // pred_check
        %p154 = pneg %p153
      $region14: #{tpu_custom_call.1} parent=5 // pred_check_branch
        %156 = sbr.rel (%p154) target = $region16
      $region15: #{tpu_custom_call.1} parent=5 // pred_region
        // Predicated region
        $region17: #{tpu_custom_call.1} parent=15 // pred_check
          %p157 = pneg %p52
        $region18: #{tpu_custom_call.1} parent=15 // pred_check_branch
          %159 = sbr.rel (%p157) target = $region20
        $region19: #{tpu_custom_call.1} parent=15 // pred_region
          %s160 = sand.u32 %s42, 1
          %s161 = scalar_lea.sflag [#allocation4], %s160
          %s162 = sand.u32 %s42, 1
          %s163 = smul.addr %s162, 16
          %s164 = scalar_lea.vmem [#allocation3], %s163
          %s165 = smul.u32 2, %s25
          %s167 = ssub.s32 256, 256
          %168 = vsyncadd %s161, %s167
          %s169 = smul.addr %s165, 3
          %s170 = sadd.s32 %s26, %s169
          %s171 = smul.addr %s170, 128
          %s172 = scalar_lea.hbm %s0, %s171
          %s173 = sshll.u32 %s164, 4
          %s174 = int_to_ptr.vmem [resolvable:$true] %s173
          %179 = dma.hbm_to_vmem [thread:$0]  %s172, 256, %s174, %s161, 384, 128, 8
        $region20: #{tpu_custom_call.1} parent=15 // pred_fallthru
          _
        // Predicated region
        $region21: #{tpu_custom_call.1} parent=15 // pred_check
          %p180 = pneg %p78
        $region22: #{tpu_custom_call.1} parent=15 // pred_check_branch
          %182 = sbr.rel (%p180) target = $region24
        $region23: #{tpu_custom_call.1} parent=15 // pred_region
          %s183 = sand.u32 %s18, 1
          %s184 = scalar_lea.sflag [#allocation7], %s183
          %s185 = sand.u32 %s68, 1
          %s186 = smul.addr %s185, 16
          %s187 = scalar_lea.vmem [#allocation6], %s186
          %s188 = smul.u32 2, %s25
          %s190 = ssub.s32 256, 256
          %191 = vsyncadd %s184, %s190
          %s192 = smul.addr %s188, 3
          %s193 = sadd.s32 1, %s192
          %s194 = smul.addr %s193, 128
          %s195 = scalar_lea.hbm %s1, %s194
          %s196 = sshll.u32 %s187, 4
          %s197 = int_to_ptr.vmem [resolvable:$true] %s196
          %202 = dma.hbm_to_vmem [thread:$0]  %s195, 256, %s197, %s184, 384, 128, 8
        $region24: #{tpu_custom_call.1} parent=15 // pred_fallthru
          _
        // Predicated region
        $region25: #{tpu_custom_call.1} parent=15 // pred_check
          %p203 = pneg %p104
        $region26: #{tpu_custom_call.1} parent=15 // pred_check_branch
          %205 = sbr.rel (%p203) target = $region28
        $region27: #{tpu_custom_call.1} parent=15 // pred_region
          %s206 = sand.u32 %s18, 1
          %s207 = scalar_lea.sflag [#allocation7], %s206
          %s208 = sand.u32 %s94, 1
          %s209 = smul.addr %s208, 16
          %s210 = scalar_lea.vmem [#allocation8], %s209
          %s211 = smul.u32 2, %s25
          %s213 = ssub.s32 256, 256
          %214 = vsyncadd %s207, %s213
          %s215 = smul.addr %s211, 3
          %s216 = sadd.s32 2, %s215
          %s217 = smul.addr %s216, 128
          %s218 = scalar_lea.hbm %s2, %s217
          %s219 = sshll.u32 %s210, 4
          %s220 = int_to_ptr.vmem [resolvable:$true] %s219
          %225 = dma.hbm_to_vmem [thread:$0]  %s218, 256, %s220, %s207, 384, 128, 8
        $region28: #{tpu_custom_call.1} parent=15 // pred_fallthru
          _
      $region16: #{tpu_custom_call.1} parent=5 // pred_fallthru
        _
      %p226 = scmp.le.s32.totalorder 1, %s18
      %p227 = scmp.lt.s32.totalorder %s18, 3
      %p228 = pnand %p226, %p227
      %p229 = pneg %p228
      // Predicated region
      $region29: #{tpu_custom_call.1} parent=5 // pred_check
        _
      $region30: #{tpu_custom_call.1} parent=5 // pred_check_branch
        %231 = sbr.rel (%p228) target = $region32
      $region31: #{tpu_custom_call.1} parent=5 // pred_region
        %s232 = ssub.s32 %s18, 1
        %s233 = sand.u32 %s45, 1
        %s234 = scalar_lea.sflag [#allocation4], %s233
        %s235 = sand.u32 %s45, 1
        %s236 = smul.addr %s235, 16
        %s237 = scalar_lea.vmem [#allocation3], %s236
        // Predicated region
        $region33: #{tpu_custom_call.1} parent=31 // pred_check
          %p238 = pneg %p58
        $region34: #{tpu_custom_call.1} parent=31 // pred_check_branch
          %240 = sbr.rel (%p238) target = $region36
        $region35: #{tpu_custom_call.1} parent=31 // pred_region
          %241 = dma.done %s234, 256
        $region36: #{tpu_custom_call.1} parent=31 // pred_fallthru
          _
        %s242 = sand.u32 %s23, 1
        %s243 = scalar_lea.sflag [#allocation7], %s242
        %s244 = sand.u32 %s71, 1
        %s245 = smul.addr %s244, 16
        %s246 = scalar_lea.vmem [#allocation6], %s245
        // Predicated region
        $region37: #{tpu_custom_call.1} parent=31 // pred_check
          %p247 = pneg %p84
        $region38: #{tpu_custom_call.1} parent=31 // pred_check_branch
          %249 = sbr.rel (%p247) target = $region40
        $region39: #{tpu_custom_call.1} parent=31 // pred_region
          %250 = dma.done %s243, 256
        $region40: #{tpu_custom_call.1} parent=31 // pred_fallthru
          _
        %s251 = sand.u32 %s23, 1
        %s252 = scalar_lea.sflag [#allocation7], %s251
        %s253 = sand.u32 %s97, 1
        %s254 = smul.addr %s253, 16
        %s255 = scalar_lea.vmem [#allocation8], %s254
        // Predicated region
        $region41: #{tpu_custom_call.1} parent=31 // pred_check
          %p256 = pneg %p110
        $region42: #{tpu_custom_call.1} parent=31 // pred_check_branch
          %258 = sbr.rel (%p256) target = $region44
        $region43: #{tpu_custom_call.1} parent=31 // pred_region
          %259 = dma.done %s252, 256
        $region44: #{tpu_custom_call.1} parent=31 // pred_fallthru
          _
        %s260 = sand.u32 %s45, 1
        %s261 = scalar_lea.sflag [#allocation4], %s260
        %s262 = sand.u32 %s45, 1
        %s263 = smul.addr %s262, 16
        %s264 = scalar_lea.vmem [#allocation3], %s263
        %p265 = pneg %p58
        %p266 = pneg %p55
        %s267 = sand.u32 %s23, 1
        %s268 = scalar_lea.sflag [#allocation7], %s267
        %s269 = sand.u32 %s71, 1
        %s270 = smul.addr %s269, 16
        %s271 = scalar_lea.vmem [#allocation6], %s270
        %p272 = pneg %p84
        %p273 = pneg %p81
        %s274 = sand.u32 %s23, 1
        %s275 = scalar_lea.sflag [#allocation7], %s274
        %s276 = sand.u32 %s97, 1
        %s277 = smul.addr %s276, 16
        %s278 = scalar_lea.vmem [#allocation8], %s277
        %p279 = pneg %p110
        %p280 = pneg %p107
        %p281 = pneg %p138
        %p282 = pneg %p135
        %s283 = sand.u32 %s125, 1
        %s284 = scalar_lea.sflag [#allocation5], %s283
        %s285 = sand.u32 %s125, 1
        %s286 = smul.addr %s285, 16
        %s287 = scalar_lea.vmem [#allocation9], %s286
        %s288 = smul.u32 2, %s27
        %s289 = smul.u32 2, %s27
        %s290 = smul.u32 2, %s27
        %s291 = smul.u32 2, %s27
        %p292 = scmp.eq.s32.totalorder %s28, 0
        // Predicated region
        $region45: #{tpu_custom_call.1} parent=31 // pred_check
          %p293 = pneg %p292
        $region46: #{tpu_custom_call.1} parent=31 // pred_check_branch
          %295 = sbr.rel (%p293) target = $region48
        $region47: #{tpu_custom_call.1} parent=31 // pred_region
          %v296 = vld [vmem:[%s246] sm:$0xff]
          %v297 = vld [vmem:[%s246 + $0x8] sm:$0xff]
          %298 = vxpose.xlu0.b32.start [1/16] %v296, 128
          %299 = vxpose.xlu0.b32.cont [2/16] 0.0, 128
          %300 = vxpose.xlu0.b32.cont [3/16] 0.0, 128
          %301 = vxpose.xlu0.b32.cont [4/16] 0.0, 128
          %302 = vxpose.xlu0.b32.cont [5/16] 0.0, 128
          %303 = vxpose.xlu0.b32.cont [6/16] 0.0, 128
          %304 = vxpose.xlu0.b32.cont [7/16] 0.0, 128
          %305 = vxpose.xlu0.b32.cont [8/16] 0.0, 128
          %306 = vxpose.xlu0.b32.cont [9/16] 0.0, 128
          %307 = vxpose.xlu0.b32.cont [10/16] 0.0, 128
          %308 = vxpose.xlu0.b32.cont [11/16] 0.0, 128
          %309 = vxpose.xlu0.b32.cont [12/16] 0.0, 128
          %310 = vxpose.xlu0.b32.cont [13/16] 0.0, 128
          %311 = vxpose.xlu0.b32.cont [14/16] 0.0, 128
          %312 = vxpose.xlu0.b32.cont [15/16] 0.0, 128
          %313 = vxpose.xlu0.b32.end [16/16] 0.0, 128
          %v314 = vpop.trf.xlu0
          %v315 = vpop.trf.xlu0
          %v316 = vpop.trf.xlu0
          %v317 = vpop.trf.xlu0
          %v318 = vpop.trf.xlu0
          %v319 = vpop.trf.xlu0
          %v320 = vpop.trf.xlu0
          %v321 = vpop.trf.xlu0
          %v322 = vpop.trf.xlu0
          %v323 = vpop.trf.xlu0
          %v324 = vpop.trf.xlu0
          %v325 = vpop.trf.xlu0
          %v326 = vpop.trf.xlu0
          %v327 = vpop.trf.xlu0
          %v328 = vpop.trf.xlu0
          %v329 = vpop.trf.xlu0
          %330 = vxpose.xlu0.b32.start [1/16] %v297, 128
          %331 = vxpose.xlu0.b32.cont [2/16] 0.0, 128
          %332 = vxpose.xlu0.b32.cont [3/16] 0.0, 128
          %333 = vxpose.xlu0.b32.cont [4/16] 0.0, 128
          %334 = vxpose.xlu0.b32.cont [5/16] 0.0, 128
          %335 = vxpose.xlu0.b32.cont [6/16] 0.0, 128
          %336 = vxpose.xlu0.b32.cont [7/16] 0.0, 128
          %337 = vxpose.xlu0.b32.cont [8/16] 0.0, 128
          %338 = vxpose.xlu0.b32.cont [9/16] 0.0, 128
          %339 = vxpose.xlu0.b32.cont [10/16] 0.0, 128
          %340 = vxpose.xlu0.b32.cont [11/16] 0.0, 128
          %341 = vxpose.xlu0.b32.cont [12/16] 0.0, 128
          %342 = vxpose.xlu0.b32.cont [13/16] 0.0, 128
          %343 = vxpose.xlu0.b32.cont [14/16] 0.0, 128
          %344 = vxpose.xlu0.b32.cont [15/16] 0.0, 128
          %345 = vxpose.xlu0.b32.end [16/16] 0.0, 128
          %v346 = vpop.trf.xlu0
          %v347 = vpop.trf.xlu0
          %v348 = vpop.trf.xlu0
          %v349 = vpop.trf.xlu0
          %v350 = vpop.trf.xlu0
          %v351 = vpop.trf.xlu0
          %v352 = vpop.trf.xlu0
          %v353 = vpop.trf.xlu0
          %v354 = vpop.trf.xlu0
          %v355 = vpop.trf.xlu0
          %v356 = vpop.trf.xlu0
          %v357 = vpop.trf.xlu0
          %v358 = vpop.trf.xlu0
          %v359 = vpop.trf.xlu0
          %v360 = vpop.trf.xlu0
          %v361 = vpop.trf.xlu0
          %vm362 = vcmask 64512
          %363 = vst.msk [vmem:[#allocation2] sm:$0xff] %vm362, %v314
          %364 = vst.msk [vmem:[#allocation2 + $0x8] sm:$0xff] %vm362, %v315
          %365 = vst.msk [vmem:[#allocation2 + $0x10] sm:$0xff] %vm362, %v316
          %366 = vst.msk [vmem:[#allocation2 + $0x18] sm:$0xff] %vm362, %v317
          %367 = vst.msk [vmem:[#allocation2 + $0x20] sm:$0xff] %vm362, %v318
          %368 = vst.msk [vmem:[#allocation2 + $0x28] sm:$0xff] %vm362, %v319
          %369 = vst.msk [vmem:[#allocation2 + $0x30] sm:$0xff] %vm362, %v320
          %370 = vst.msk [vmem:[#allocation2 + $0x38] sm:$0xff] %vm362, %v321
          %371 = vst.msk [vmem:[#allocation2 + $0x40] sm:$0xff] %vm362, %v322
          %372 = vst.msk [vmem:[#allocation2 + $0x48] sm:$0xff] %vm362, %v323
          %373 = vst.msk [vmem:[#allocation2 + $0x50] sm:$0xff] %vm362, %v324
          %374 = vst.msk [vmem:[#allocation2 + $0x58] sm:$0xff] %vm362, %v325
          %375 = vst.msk [vmem:[#allocation2 + $0x60] sm:$0xff] %vm362, %v326
          %376 = vst.msk [vmem:[#allocation2 + $0x68] sm:$0xff] %vm362, %v327
          %377 = vst.msk [vmem:[#allocation2 + $0x70] sm:$0xff] %vm362, %v328
          %378 = vst.msk [vmem:[#allocation2 + $0x78] sm:$0xff] %vm362, %v329
          %379 = vst.msk [vmem:[#allocation2 + $0x80] sm:$0xff] %vm362, %v346
          %380 = vst.msk [vmem:[#allocation2 + $0x88] sm:$0xff] %vm362, %v347
          %381 = vst.msk [vmem:[#allocation2 + $0x90] sm:$0xff] %vm362, %v348
          %382 = vst.msk [vmem:[#allocation2 + $0x98] sm:$0xff] %vm362, %v349
          %383 = vst.msk [vmem:[#allocation2 + $0xa0] sm:$0xff] %vm362, %v350
          %384 = vst.msk [vmem:[#allocation2 + $0xa8] sm:$0xff] %vm362, %v351
          %385 = vst.msk [vmem:[#allocation2 + $0xb0] sm:$0xff] %vm362, %v352
          %386 = vst.msk [vmem:[#allocation2 + $0xb8] sm:$0xff] %vm362, %v353
          %387 = vst.msk [vmem:[#allocation2 + $0xc0] sm:$0xff] %vm362, %v354
          %388 = vst.msk [vmem:[#allocation2 + $0xc8] sm:$0xff] %vm362, %v355
          %389 = vst.msk [vmem:[#allocation2 + $0xd0] sm:$0xff] %vm362, %v356
          %390 = vst.msk [vmem:[#allocation2 + $0xd8] sm:$0xff] %vm362, %v357
          %391 = vst.msk [vmem:[#allocation2 + $0xe0] sm:$0xff] %vm362, %v358
          %392 = vst.msk [vmem:[#allocation2 + $0xe8] sm:$0xff] %vm362, %v359
          %393 = vst.msk [vmem:[#allocation2 + $0xf0] sm:$0xff] %vm362, %v360
          %394 = vst.msk [vmem:[#allocation2 + $0xf8] sm:$0xff] %vm362, %v361
        $region48: #{tpu_custom_call.1} parent=31 // pred_fallthru
          _
        %v395 = vld [vmem:[%s237] sm:$0xff]
        %v396 = vld [vmem:[%s237 + $0x8] sm:$0xff]
        %v397 = vmul.f32 %v395, 0.35355338
        %v398 = vmul.f32 %v396, 0.35355338
        %v399 = vld [vmem:[#allocation2] sm:$0xff]
        %v400 = vld [vmem:[#allocation2 + $0x8] sm:$0xff]
        %v401 = vld [vmem:[#allocation2 + $0x10] sm:$0xff]
        %v402 = vld [vmem:[#allocation2 + $0x18] sm:$0xff]
        %v403 = vld [vmem:[#allocation2 + $0x20] sm:$0xff]
        %v404 = vld [vmem:[#allocation2 + $0x28] sm:$0xff]
        %v405 = vld [vmem:[#allocation2 + $0x30] sm:$0xff]
        %v406 = vld [vmem:[#allocation2 + $0x38] sm:$0xff]
        %v407 = vld [vmem:[#allocation2 + $0x40] sm:$0xff]
        %v408 = vld [vmem:[#allocation2 + $0x48] sm:$0xff]
        %v409 = vld [vmem:[#allocation2 + $0x50] sm:$0xff]
        %v410 = vld [vmem:[#allocation2 + $0x58] sm:$0xff]
        %v411 = vld [vmem:[#allocation2 + $0x60] sm:$0xff]
        %v412 = vld [vmem:[#allocation2 + $0x68] sm:$0xff]
        %v413 = vld [vmem:[#allocation2 + $0x70] sm:$0xff]
        %v414 = vld [vmem:[#allocation2 + $0x78] sm:$0xff]
        %v415 = vld [vmem:[#allocation2 + $0x80] sm:$0xff]
        %v416 = vld [vmem:[#allocation2 + $0x88] sm:$0xff]
        %v417 = vld [vmem:[#allocation2 + $0x90] sm:$0xff]
        %v418 = vld [vmem:[#allocation2 + $0x98] sm:$0xff]
        %v419 = vld [vmem:[#allocation2 + $0xa0] sm:$0xff]
        %v420 = vld [vmem:[#allocation2 + $0xa8] sm:$0xff]
        %v421 = vld [vmem:[#allocation2 + $0xb0] sm:$0xff]
        %v422 = vld [vmem:[#allocation2 + $0xb8] sm:$0xff]
        %v423 = vld [vmem:[#allocation2 + $0xc0] sm:$0xff]
        %v424 = vld [vmem:[#allocation2 + $0xc8] sm:$0xff]
        %v425 = vld [vmem:[#allocation2 + $0xd0] sm:$0xff]
        %v426 = vld [vmem:[#allocation2 + $0xd8] sm:$0xff]
        %v427 = vld [vmem:[#allocation2 + $0xe0] sm:$0xff]
        %v428 = vld [vmem:[#allocation2 + $0xe8] sm:$0xff]
        %v429 = vld [vmem:[#allocation2 + $0xf0] sm:$0xff]
        %v430 = vld [vmem:[#allocation2 + $0xf8] sm:$0xff]
        %vm431 = vcmask 64512
        %v433 = vsel %vm431, %v399, 0
        %v436 = vsel %vm431, %v400, 0
        %v439 = vsel %vm431, %v401, 0
        %v442 = vsel %vm431, %v402, 0
        %v445 = vsel %vm431, %v403, 0
        %v448 = vsel %vm431, %v404, 0
        %v451 = vsel %vm431, %v405, 0
        %v454 = vsel %vm431, %v406, 0
        %v457 = vsel %vm431, %v407, 0
        %v460 = vsel %vm431, %v408, 0
        %v463 = vsel %vm431, %v409, 0
        %v466 = vsel %vm431, %v410, 0
        %v469 = vsel %vm431, %v411, 0
        %v472 = vsel %vm431, %v412, 0
        %v475 = vsel %vm431, %v413, 0
        %v478 = vsel %vm431, %v414, 0
        %480 = vmatprep.subr.mxu0 0.0
        %481 = vmatpush1.msra.mxu0 %v397
        %482 = vmatprep.subr.mxu0 0.0
        %483 = vmatpush1.msra.mxu0 0.0
        %484 = vmatprep.subr.mxu0 0.0
        %485 = vmatpush1.msra.mxu0 0.0
        %486 = vmatprep.subr.mxu0 0.0
        %487 = vmatpush1.msra.mxu0 0.0
        %488 = vmatprep.subr.mxu0 0.0
        %489 = vmatpush1.msra.mxu0 0.0
        %490 = vmatprep.subr.mxu0 0.0
        %491 = vmatpush1.msra.mxu0 0.0
        %492 = vmatprep.subr.mxu0 0.0
        %493 = vmatpush1.msra.mxu0 0.0
        %494 = vmatprep.subr.mxu0 0.0
        %495 = vmatpush1.msra.mxu0 0.0
        %496 = vmatprep.subr.mxu0 0.0
        %497 = vmatpush1.msra.mxu0 0.0
        %498 = vmatprep.subr.mxu0 0.0
        %499 = vmatpush1.msra.mxu0 0.0
        %500 = vmatprep.subr.mxu0 0.0
        %501 = vmatpush1.msra.mxu0 0.0
        %502 = vmatprep.subr.mxu0 0.0
        %503 = vmatpush1.msra.mxu0 0.0
        %504 = vmatprep.subr.mxu0 0.0
        %505 = vmatpush1.msra.mxu0 0.0
        %506 = vmatprep.subr.mxu0 0.0
        %507 = vmatpush1.msra.mxu0 0.0
        %508 = vmatprep.subr.mxu0 0.0
        %509 = vmatpush1.msra.mxu0 0.0
        %510 = vmatprep.subr.mxu0 0.0
        %511 = vmatpush1.msra.mxu0 0.0
        %512 = vmatprep.subr.mxu0 0.0
        %513 = vmatpush1.msra.mxu0 0.0
        %514 = vmatprep.subr.mxu0 0.0
        %515 = vmatpush1.msra.mxu0 0.0
        %516 = vmatprep.subr.mxu0 0.0
        %517 = vmatpush1.msra.mxu0 0.0
        %518 = vmatprep.subr.mxu0 0.0
        %519 = vmatpush1.msra.mxu0 0.0
        %520 = vmatprep.subr.mxu0 0.0
        %521 = vmatpush1.msra.mxu0 0.0
        %522 = vmatprep.subr.mxu0 0.0
        %523 = vmatpush1.msra.mxu0 0.0
        %524 = vmatprep.subr.mxu0 0.0
        %525 = vmatpush1.msra.mxu0 0.0
        %526 = vmatprep.subr.mxu0 0.0
        %527 = vmatpush1.msra.mxu0 0.0
        %528 = vmatprep.subr.mxu0 0.0
        %529 = vmatpush1.msra.mxu0 0.0
        %530 = vmatprep.subr.mxu0 0.0
        %531 = vmatpush1.msra.mxu0 0.0
        %532 = vmatprep.subr.mxu0 0.0
        %533 = vmatpush1.msra.mxu0 0.0
        %534 = vmatprep.subr.mxu0 0.0
        %535 = vmatpush1.msra.mxu0 0.0
        %536 = vmatprep.subr.mxu0 0.0
        %537 = vmatpush1.msra.mxu0 0.0
        %538 = vmatprep.subr.mxu0 0.0
        %539 = vmatpush1.msra.mxu0 0.0
        %540 = vmatprep.subr.mxu0 0.0
        %541 = vmatpush1.msra.mxu0 0.0
        %542 = vmatprep.subr.mxu0 0.0
        %543 = vmatpush1.msra.mxu0 0.0
        %544 = vmatprep.mubr.f32.mxu0 0.0
        %545 = vmatmul.mubr.f32.gmra.mrb[0].mxu0 %v433
        %v546 = vpop.f32.mrb[0].mxu0
        %v547 = vadd.f32 0.0, %v546
        %v548 = vpop.f32.mrb[0].mxu0
        %549 = vmatprep.mubr.f32.mxu0 0.0
        %550 = vmatmul.mubr.f32.gmra.mrb[0].mxu0 %v436
        %v551 = vpop.f32.mrb[0].mxu0
        %v552 = vadd.f32 0.0, %v551
        %v553 = vpop.f32.mrb[0].mxu0
        %554 = vmatprep.mubr.f32.mxu0 0.0
        %555 = vmatmul.mubr.f32.gmra.mrb[0].mxu0 %v439
        %v556 = vpop.f32.mrb[0].mxu0
        %v557 = vadd.f32 0.0, %v556
        %v558 = vpop.f32.mrb[0].mxu0
        %559 = vmatprep.mubr.f32.mxu0 0.0
        %560 = vmatmul.mubr.f32.gmra.mrb[0].mxu0 %v442
        %v561 = vpop.f32.mrb[0].mxu0
        %v562 = vadd.f32 0.0, %v561
        %v563 = vpop.f32.mrb[0].mxu0
        %564 = vmatprep.mubr.f32.mxu0 0.0
        %565 = vmatmul.mubr.f32.gmra.mrb[0].mxu0 %v445
        %v566 = vpop.f32.mrb[0].mxu0
        %v567 = vadd.f32 0.0, %v566
        %v568 = vpop.f32.mrb[0].mxu0
        %569 = vmatprep.mubr.f32.mxu0 0.0
        %570 = vmatmul.mubr.f32.gmra.mrb[0].mxu0 %v448
        %v571 = vpop.f32.mrb[0].mxu0
        %v572 = vadd.f32 0.0, %v571
        %v573 = vpop.f32.mrb[0].mxu0
        %574 = vmatprep.mubr.f32.mxu0 0.0
        %575 = vmatmul.mubr.f32.gmra.mrb[0].mxu0 %v451
        %v576 = vpop.f32.mrb[0].mxu0
        %v577 = vadd.f32 0.0, %v576
        %v578 = vpop.f32.mrb[0].mxu0
        %579 = vmatprep.mubr.f32.mxu0 0.0
        %580 = vmatmul.mubr.f32.gmra.mrb[0].mxu0 %v454
        %v581 = vpop.f32.mrb[0].mxu0
        %v582 = vadd.f32 0.0, %v581
        %v583 = vpop.f32.mrb[0].mxu0
        %584 = vmatprep.mubr.f32.mxu0 0.0
        %585 = vmatmul.mubr.f32.gmra.mrb[0].mxu0 %v457
        %v586 = vpop.f32.mrb[0].mxu0
        %v587 = vadd.f32 0.0, %v586
        %v588 = vpop.f32.mrb[0].mxu0
        %589 = vmatprep.mubr.f32.mxu0 0.0
        %590 = vmatmul.mubr.f32.gmra.mrb[0].mxu0 %v460
        %v591 = vpop.f32.mrb[0].mxu0
        %v592 = vadd.f32 0.0, %v591
        %v593 = vpop.f32.mrb[0].mxu0
        %594 = vmatprep.mubr.f32.mxu0 0.0
        %595 = vmatmul.mubr.f32.gmra.mrb[0].mxu0 %v463
        %v596 = vpop.f32.mrb[0].mxu0
        %v597 = vadd.f32 0.0, %v596
        %v598 = vpop.f32.mrb[0].mxu0
        %599 = vmatprep.mubr.f32.mxu0 0.0
        %600 = vmatmul.mubr.f32.gmra.mrb[0].mxu0 %v466
        %v601 = vpop.f32.mrb[0].mxu0
        %v602 = vadd.f32 0.0, %v601
        %v603 = vpop.f32.mrb[0].mxu0
        %604 = vmatprep.mubr.f32.mxu0 0.0
        %605 = vmatmul.mubr.f32.gmra.mrb[0].mxu0 %v469
        %v606 = vpop.f32.mrb[0].mxu0
        %v607 = vadd.f32 0.0, %v606
        %v608 = vpop.f32.mrb[0].mxu0
        %609 = vmatprep.mubr.f32.mxu0 0.0
        %610 = vmatmul.mubr.f32.gmra.mrb[0].mxu0 %v472
        %v611 = vpop.f32.mrb[0].mxu0
        %v612 = vadd.f32 0.0, %v611
        %v613 = vpop.f32.mrb[0].mxu0
        %614 = vmatprep.mubr.f32.mxu0 0.0
        %615 = vmatmul.mubr.f32.gmra.mrb[0].mxu0 %v475
        %v616 = vpop.f32.mrb[0].mxu0
        %v617 = vadd.f32 0.0, %v616
        %v618 = vpop.f32.mrb[0].mxu0
        %619 = vmatprep.mubr.f32.mxu0 0.0
        %620 = vmatmul.mubr.f32.gmra.mrb[0].mxu0 %v478
        %v621 = vpop.f32.mrb[0].mxu0
        %v622 = vadd.f32 0.0, %v621
        %v623 = vpop.f32.mrb[0].mxu0
        %624 = vdwg.mxu0
        %v626 = vsel %vm431, %v415, 0
        %v629 = vsel %vm431, %v416, 0
        %v632 = vsel %vm431, %v417, 0
        %v635 = vsel %vm431, %v418, 0
        %v638 = vsel %vm431, %v419, 0
        %v641 = vsel %vm431, %v420, 0
        %v644 = vsel %vm431, %v421, 0
        %v647 = vsel %vm431, %v422, 0
        %v650 = vsel %vm431, %v423, 0
        %v653 = vsel %vm431, %v424, 0
        %v656 = vsel %vm431, %v425, 0
        %v659 = vsel %vm431, %v426, 0
        %v662 = vsel %vm431, %v427, 0
        %v665 = vsel %vm431, %v428, 0
        %v668 = vsel %vm431, %v429, 0
        %v671 = vsel %vm431, %v430, 0
        %673 = vmatprep.subr.mxu0 0.0
        %674 = vmatpush1.msra.mxu0 %v398
        %675 = vmatprep.subr.mxu0 0.0
        %676 = vmatpush1.msra.mxu0 0.0
        %677 = vmatprep.subr.mxu0 0.0
        %678 = vmatpush1.msra.mxu0 0.0
        %679 = vmatprep.subr.mxu0 0.0
        %680 = vmatpush1.msra.mxu0 0.0
        %681 = vmatprep.subr.mxu0 0.0
        %682 = vmatpush1.msra.mxu0 0.0
        %683 = vmatprep.subr.mxu0 0.0
        %684 = vmatpush1.msra.mxu0 0.0
        %685 = vmatprep.subr.mxu0 0.0
        %686 = vmatpush1.msra.mxu0 0.0
        %687 = vmatprep.subr.mxu0 0.0
        %688 = vmatpush1.msra.mxu0 0.0
        %689 = vmatprep.subr.mxu0 0.0
        %690 = vmatpush1.msra.mxu0 0.0
        %691 = vmatprep.subr.mxu0 0.0
        %692 = vmatpush1.msra.mxu0 0.0
        %693 = vmatprep.subr.mxu0 0.0
        %694 = vmatpush1.msra.mxu0 0.0
        %695 = vmatprep.subr.mxu0 0.0
        %696 = vmatpush1.msra.mxu0 0.0
        %697 = vmatprep.subr.mxu0 0.0
        %698 = vmatpush1.msra.mxu0 0.0
        %699 = vmatprep.subr.mxu0 0.0
        %700 = vmatpush1.msra.mxu0 0.0
        %701 = vmatprep.subr.mxu0 0.0
        %702 = vmatpush1.msra.mxu0 0.0
        %703 = vmatprep.subr.mxu0 0.0
        %704 = vmatpush1.msra.mxu0 0.0
        %705 = vmatprep.subr.mxu0 0.0
        %706 = vmatpush1.msra.mxu0 0.0
        %707 = vmatprep.subr.mxu0 0.0
        %708 = vmatpush1.msra.mxu0 0.0
        %709 = vmatprep.subr.mxu0 0.0
        %710 = vmatpush1.msra.mxu0 0.0
        %711 = vmatprep.subr.mxu0 0.0
        %712 = vmatpush1.msra.mxu0 0.0
        %713 = vmatprep.subr.mxu0 0.0
        %714 = vmatpush1.msra.mxu0 0.0
        %715 = vmatprep.subr.mxu0 0.0
        %716 = vmatpush1.msra.mxu0 0.0
        %717 = vmatprep.subr.mxu0 0.0
        %718 = vmatpush1.msra.mxu0 0.0
        %719 = vmatprep.subr.mxu0 0.0
        %720 = vmatpush1.msra.mxu0 0.0
        %721 = vmatprep.subr.mxu0 0.0
        %722 = vmatpush1.msra.mxu0 0.0
        %723 = vmatprep.subr.mxu0 0.0
        %724 = vmatpush1.msra.mxu0 0.0
        %725 = vmatprep.subr.mxu0 0.0
        %726 = vmatpush1.msra.mxu0 0.0
        %727 = vmatprep.subr.mxu0 0.0
        %728 = vmatpush1.msra.mxu0 0.0
        %729 = vmatprep.subr.mxu0 0.0
        %730 = vmatpush1.msra.mxu0 0.0
        %731 = vmatprep.subr.mxu0 0.0
        %732 = vmatpush1.msra.mxu0 0.0
        %733 = vmatprep.subr.mxu0 0.0
        %734 = vmatpush1.msra.mxu0 0.0
        %735 = vmatprep.subr.mxu0 0.0
        %736 = vmatpush1.msra.mxu0 0.0
        %737 = vmatprep.mubr.f32.mxu0 0.0
        %738 = vmatmul.mubr.f32.gmra.mrb[0].mxu0 %v626
        %v739 = vpop.f32.mrb[0].mxu0
        %v740 = vadd.f32 0.0, %v739
        %v741 = vpop.f32.mrb[0].mxu0
        %742 = vmatprep.mubr.f32.mxu0 0.0
        %743 = vmatmul.mubr.f32.gmra.mrb[0].mxu0 %v629
        %v744 = vpop.f32.mrb[0].mxu0
        %v745 = vadd.f32 0.0, %v744
        %v746 = vpop.f32.mrb[0].mxu0
        %747 = vmatprep.mubr.f32.mxu0 0.0
        %748 = vmatmul.mubr.f32.gmra.mrb[0].mxu0 %v632
        %v749 = vpop.f32.mrb[0].mxu0
        %v750 = vadd.f32 0.0, %v749
        %v751 = vpop.f32.mrb[0].mxu0
        %752 = vmatprep.mubr.f32.mxu0 0.0
        %753 = vmatmul.mubr.f32.gmra.mrb[0].mxu0 %v635
        %v754 = vpop.f32.mrb[0].mxu0
        %v755 = vadd.f32 0.0, %v754
        %v756 = vpop.f32.mrb[0].mxu0
        %757 = vmatprep.mubr.f32.mxu0 0.0
        %758 = vmatmul.mubr.f32.gmra.mrb[0].mxu0 %v638
        %v759 = vpop.f32.mrb[0].mxu0
        %v760 = vadd.f32 0.0, %v759
        %v761 = vpop.f32.mrb[0].mxu0
        %762 = vmatprep.mubr.f32.mxu0 0.0
        %763 = vmatmul.mubr.f32.gmra.mrb[0].mxu0 %v641
        %v764 = vpop.f32.mrb[0].mxu0
        %v765 = vadd.f32 0.0, %v764
        %v766 = vpop.f32.mrb[0].mxu0
        %767 = vmatprep.mubr.f32.mxu0 0.0
        %768 = vmatmul.mubr.f32.gmra.mrb[0].mxu0 %v644
        %v769 = vpop.f32.mrb[0].mxu0
        %v770 = vadd.f32 0.0, %v769
        %v771 = vpop.f32.mrb[0].mxu0
        %772 = vmatprep.mubr.f32.mxu0 0.0
        %773 = vmatmul.mubr.f32.gmra.mrb[0].mxu0 %v647
        %v774 = vpop.f32.mrb[0].mxu0
        %v775 = vadd.f32 0.0, %v774
        %v776 = vpop.f32.mrb[0].mxu0
        %777 = vmatprep.mubr.f32.mxu0 0.0
        %778 = vmatmul.mubr.f32.gmra.mrb[0].mxu0 %v650
        %v779 = vpop.f32.mrb[0].mxu0
        %v780 = vadd.f32 0.0, %v779
        %v781 = vpop.f32.mrb[0].mxu0
        %782 = vmatprep.mubr.f32.mxu0 0.0
        %783 = vmatmul.mubr.f32.gmra.mrb[0].mxu0 %v653
        %v784 = vpop.f32.mrb[0].mxu0
        %v785 = vadd.f32 0.0, %v784
        %v786 = vpop.f32.mrb[0].mxu0
        %787 = vmatprep.mubr.f32.mxu0 0.0
        %788 = vmatmul.mubr.f32.gmra.mrb[0].mxu0 %v656
        %v789 = vpop.f32.mrb[0].mxu0
        %v790 = vadd.f32 0.0, %v789
        %v791 = vpop.f32.mrb[0].mxu0
        %792 = vmatprep.mubr.f32.mxu0 0.0
        %793 = vmatmul.mubr.f32.gmra.mrb[0].mxu0 %v659
        %v794 = vpop.f32.mrb[0].mxu0
        %v795 = vadd.f32 0.0, %v794
        %v796 = vpop.f32.mrb[0].mxu0
        %797 = vmatprep.mubr.f32.mxu0 0.0
        %798 = vmatmul.mubr.f32.gmra.mrb[0].mxu0 %v662
        %v799 = vpop.f32.mrb[0].mxu0
        %v800 = vadd.f32 0.0, %v799
        %v801 = vpop.f32.mrb[0].mxu0
        %802 = vmatprep.mubr.f32.mxu0 0.0
        %803 = vmatmul.mubr.f32.gmra.mrb[0].mxu0 %v665
        %v804 = vpop.f32.mrb[0].mxu0
        %v805 = vadd.f32 0.0, %v804
        %v806 = vpop.f32.mrb[0].mxu0
        %807 = vmatprep.mubr.f32.mxu0 0.0
        %808 = vmatmul.mubr.f32.gmra.mrb[0].mxu0 %v668
        %v809 = vpop.f32.mrb[0].mxu0
        %v810 = vadd.f32 0.0, %v809
        %v811 = vpop.f32.mrb[0].mxu0
        %812 = vmatprep.mubr.f32.mxu0 0.0
        %813 = vmatmul.mubr.f32.gmra.mrb[0].mxu0 %v671
        %v814 = vpop.f32.mrb[0].mxu0
        %v815 = vadd.f32 0.0, %v814
        %v816 = vpop.f32.mrb[0].mxu0
        %817 = vdwg.mxu0
        %v818 = vlaneseq
        %v819 = vshrl.u32 %v818, 7
        %v820 = vadd.s32 %v819, 8
        %v821 = vadd.s32 %v819, 16
        %v822 = vadd.s32 %v819, 24
        %v823 = vadd.s32 %v819, 32
        %v824 = vadd.s32 %v819, 40
        %v825 = vadd.s32 %v819, 48
        %v826 = vadd.s32 %v819, 56
        %v827 = vadd.s32 %v819, 64
        %v828 = vadd.s32 %v819, 72
        %v829 = vadd.s32 %v819, 80
        %v830 = vadd.s32 %v819, 88
        %v831 = vadd.s32 %v819, 96
        %v832 = vadd.s32 %v819, 104
        %v833 = vadd.s32 %v819, 112
        %v834 = vadd.s32 %v819, 120
        %vm835 = vcmp.lt.s32.totalorder %v819, 16
        %vm836 = vcmp.lt.s32.totalorder %v820, 16
        %vm837 = vcmp.lt.s32.totalorder %v821, 16
        %vm838 = vcmp.lt.s32.totalorder %v822, 16
        %vm839 = vcmp.lt.s32.totalorder %v823, 16
        %vm840 = vcmp.lt.s32.totalorder %v824, 16
        %vm841 = vcmp.lt.s32.totalorder %v825, 16
        %vm842 = vcmp.lt.s32.totalorder %v826, 16
        %vm843 = vcmp.lt.s32.totalorder %v827, 16
        %vm844 = vcmp.lt.s32.totalorder %v828, 16
        %vm845 = vcmp.lt.s32.totalorder %v829, 16
        %vm846 = vcmp.lt.s32.totalorder %v830, 16
        %vm847 = vcmp.lt.s32.totalorder %v831, 16
        %vm848 = vcmp.lt.s32.totalorder %v832, 16
        %vm849 = vcmp.lt.s32.totalorder %v833, 16
        %vm850 = vcmp.lt.s32.totalorder %v834, 16
        %v851 = vsel %vm835, 1, 0
        %v852 = vsel %vm836, 1, 0
        %v853 = vsel %vm837, 1, 0
        %v854 = vsel %vm838, 1, 0
        %v855 = vsel %vm839, 1, 0
        %v856 = vsel %vm840, 1, 0
        %v857 = vsel %vm841, 1, 0
        %v858 = vsel %vm842, 1, 0
        %v859 = vsel %vm843, 1, 0
        %v860 = vsel %vm844, 1, 0
        %v861 = vsel %vm845, 1, 0
        %v862 = vsel %vm846, 1, 0
        %v863 = vsel %vm847, 1, 0
        %v864 = vsel %vm848, 1, 0
        %v865 = vsel %vm849, 1, 0
        %v866 = vsel %vm850, 1, 0
        %vm867 = vcmp.eq.s32.totalorder %v851, 1
        %vm868 = vcmp.eq.s32.totalorder %v852, 1
        %vm869 = vcmp.eq.s32.totalorder %v853, 1
        %vm870 = vcmp.eq.s32.totalorder %v854, 1
        %vm871 = vcmp.eq.s32.totalorder %v855, 1
        %vm872 = vcmp.eq.s32.totalorder %v856, 1
        %vm873 = vcmp.eq.s32.totalorder %v857, 1
        %vm874 = vcmp.eq.s32.totalorder %v858, 1
        %vm875 = vcmp.eq.s32.totalorder %v859, 1
        %vm876 = vcmp.eq.s32.totalorder %v860, 1
        %vm877 = vcmp.eq.s32.totalorder %v861, 1
        %vm878 = vcmp.eq.s32.totalorder %v862, 1
        %vm879 = vcmp.eq.s32.totalorder %v863, 1
        %vm880 = vcmp.eq.s32.totalorder %v864, 1
        %vm881 = vcmp.eq.s32.totalorder %v865, 1
        %vm882 = vcmp.eq.s32.totalorder %v866, 1
        %v883 = vsel %vm867, %v547, -inf
        %v884 = vsel %vm868, %v552, -inf
        %v885 = vsel %vm869, %v557, -inf
        %v886 = vsel %vm870, %v562, -inf
        %v887 = vsel %vm871, %v567, -inf
        %v888 = vsel %vm872, %v572, -inf
        %v889 = vsel %vm873, %v577, -inf
        %v890 = vsel %vm874, %v582, -inf
        %v891 = vsel %vm875, %v587, -inf
        %v892 = vsel %vm876, %v592, -inf
        %v893 = vsel %vm877, %v597, -inf
        %v894 = vsel %vm878, %v602, -inf
        %v895 = vsel %vm879, %v607, -inf
        %v896 = vsel %vm880, %v612, -inf
        %v897 = vsel %vm881, %v617, -inf
        %v898 = vsel %vm882, %v622, -inf
        %v899 = vsel %vm867, %v740, -inf
        %v900 = vsel %vm868, %v745, -inf
        %v901 = vsel %vm869, %v750, -inf
        %v902 = vsel %vm870, %v755, -inf
        %v903 = vsel %vm871, %v760, -inf
        %v904 = vsel %vm872, %v765, -inf
        %v905 = vsel %vm873, %v770, -inf
        %v906 = vsel %vm874, %v775, -inf
        %v907 = vsel %vm875, %v780, -inf
        %v908 = vsel %vm876, %v785, -inf
        %v909 = vsel %vm877, %v790, -inf
        %v910 = vsel %vm878, %v795, -inf
        %v911 = vsel %vm879, %v800, -inf
        %v912 = vsel %vm880, %v805, -inf
        %v913 = vsel %vm881, %v810, -inf
        %v914 = vsel %vm882, %v815, -inf
        %v915 = vmax.f32 %v883, %v885
        %v916 = vmax.f32 %v884, %v886
        %v917 = vmax.f32 %v915, %v887
        %v918 = vmax.f32 %v916, %v888
        %v919 = vmax.f32 %v917, %v889
        %v920 = vmax.f32 %v918, %v890
        %v921 = vmax.f32 %v919, %v891
        %v922 = vmax.f32 %v920, %v892
        %v923 = vmax.f32 %v921, %v893
        %v924 = vmax.f32 %v922, %v894
        %v925 = vmax.f32 %v923, %v895
        %v926 = vmax.f32 %v924, %v896
        %v927 = vmax.f32 %v925, %v897
        %v928 = vmax.f32 %v926, %v898
        %v929 = vmax.f32 %v927, %v928
        %v930 = vrot.slane %v929, 4
        %v931 = vmax.f32 %v929, %v930
        %v932 = vrot.slane %v931, 2
        %v933 = vmax.f32 %v931, %v932
        %v934 = vrot.slane %v933, 1
        %v935 = vmax.f32 %v933, %v934
        %v936 = vmax.f32 %v899, %v901
        %v937 = vmax.f32 %v900, %v902
        %v938 = vmax.f32 %v936, %v903
        %v939 = vmax.f32 %v937, %v904
        %v940 = vmax.f32 %v938, %v905
        %v941 = vmax.f32 %v939, %v906
        %v942 = vmax.f32 %v940, %v907
        %v943 = vmax.f32 %v941, %v908
        %v944 = vmax.f32 %v942, %v909
        %v945 = vmax.f32 %v943, %v910
        %v946 = vmax.f32 %v944, %v911
        %v947 = vmax.f32 %v945, %v912
        %v948 = vmax.f32 %v946, %v913
        %v949 = vmax.f32 %v947, %v914
        %v950 = vmax.f32 %v948, %v949
        %v951 = vrot.slane %v950, 4
        %v952 = vmax.f32 %v950, %v951
        %v953 = vrot.slane %v952, 2
        %v954 = vmax.f32 %v952, %v953
        %v955 = vrot.slane %v954, 1
        %v956 = vmax.f32 %v954, %v955
        %v957 = vsub.f32 %v883, %v935
        %v958 = vsub.f32 %v884, %v935
        %v959 = vsub.f32 %v885, %v935
        %v960 = vsub.f32 %v886, %v935
        %v961 = vsub.f32 %v887, %v935
        %v962 = vsub.f32 %v888, %v935
        %v963 = vsub.f32 %v889, %v935
        %v964 = vsub.f32 %v890, %v935
        %v965 = vsub.f32 %v891, %v935
        %v966 = vsub.f32 %v892, %v935
        %v967 = vsub.f32 %v893, %v935
        %v968 = vsub.f32 %v894, %v935
        %v969 = vsub.f32 %v895, %v935
        %v970 = vsub.f32 %v896, %v935
        %v971 = vsub.f32 %v897, %v935
        %v972 = vsub.f32 %v898, %v935
        %v973 = vsub.f32 %v899, %v956
        %v974 = vsub.f32 %v900, %v956
        %v975 = vsub.f32 %v901, %v956
        %v976 = vsub.f32 %v902, %v956
        %v977 = vsub.f32 %v903, %v956
        %v978 = vsub.f32 %v904, %v956
        %v979 = vsub.f32 %v905, %v956
        %v980 = vsub.f32 %v906, %v956
        %v981 = vsub.f32 %v907, %v956
        %v982 = vsub.f32 %v908, %v956
        %v983 = vsub.f32 %v909, %v956
        %v984 = vsub.f32 %v910, %v956
        %v985 = vsub.f32 %v911, %v956
        %v986 = vsub.f32 %v912, %v956
        %v987 = vsub.f32 %v913, %v956
        %v988 = vsub.f32 %v914, %v956
        %v989 = vmul.f32 %v957, 1.442695
        %v990 = vpow.pop %v989
        %v991 = vmul.f32 %v958, 1.442695
        %v992 = vpow.pop %v991
        %v993 = vmul.f32 %v959, 1.442695
        %v994 = vpow.pop %v993
        %v995 = vmul.f32 %v960, 1.442695
        %v996 = vpow.pop %v995
        %v997 = vmul.f32 %v961, 1.442695
        %v998 = vpow.pop %v997
        %v999 = vmul.f32 %v962, 1.442695
        %v1000 = vpow.pop %v999
        %v1001 = vmul.f32 %v963, 1.442695
        %v1002 = vpow.pop %v1001
        %v1003 = vmul.f32 %v964, 1.442695
        %v1004 = vpow.pop %v1003
        %v1005 = vmul.f32 %v965, 1.442695
        %v1006 = vpow.pop %v1005
        %v1007 = vmul.f32 %v966, 1.442695
        %v1008 = vpow.pop %v1007
        %v1009 = vmul.f32 %v967, 1.442695
        %v1010 = vpow.pop %v1009
        %v1011 = vmul.f32 %v968, 1.442695
        %v1012 = vpow.pop %v1011
        %v1013 = vmul.f32 %v969, 1.442695
        %v1014 = vpow.pop %v1013
        %v1015 = vmul.f32 %v970, 1.442695
        %v1016 = vpow.pop %v1015
        %v1017 = vmul.f32 %v971, 1.442695
        %v1018 = vpow.pop %v1017
        %v1019 = vmul.f32 %v972, 1.442695
        %v1020 = vpow.pop %v1019
        %v1021 = vmul.f32 %v973, 1.442695
        %v1022 = vpow.pop %v1021
        %v1023 = vmul.f32 %v974, 1.442695
        %v1024 = vpow.pop %v1023
        %v1025 = vmul.f32 %v975, 1.442695
        %v1026 = vpow.pop %v1025
        %v1027 = vmul.f32 %v976, 1.442695
        %v1028 = vpow.pop %v1027
        %v1029 = vmul.f32 %v977, 1.442695
        %v1030 = vpow.pop %v1029
        %v1031 = vmul.f32 %v978, 1.442695
        %v1032 = vpow.pop %v1031
        %v1033 = vmul.f32 %v979, 1.442695
        %v1034 = vpow.pop %v1033
        %v1035 = vmul.f32 %v980, 1.442695
        %v1036 = vpow.pop %v1035
        %v1037 = vmul.f32 %v981, 1.442695
        %v1038 = vpow.pop %v1037
        %v1039 = vmul.f32 %v982, 1.442695
        %v1040 = vpow.pop %v1039
        %v1041 = vmul.f32 %v983, 1.442695
        %v1042 = vpow.pop %v1041
        %v1043 = vmul.f32 %v984, 1.442695
        %v1044 = vpow.pop %v1043
        %v1045 = vmul.f32 %v985, 1.442695
        %v1046 = vpow.pop %v1045
        %v1047 = vmul.f32 %v986, 1.442695
        %v1048 = vpow.pop %v1047
        %v1049 = vmul.f32 %v987, 1.442695
        %v1050 = vpow.pop %v1049
        %v1051 = vmul.f32 %v988, 1.442695
        %v1052 = vpow.pop %v1051
        %v1053 = vadd.f32 %v990, %v992
        %v1054 = vadd.f32 %v1053, %v994
        %v1055 = vadd.f32 %v1054, %v996
        %v1056 = vadd.f32 %v1055, %v998
        %v1057 = vadd.f32 %v1056, %v1000
        %v1058 = vadd.f32 %v1057, %v1002
        %v1059 = vadd.f32 %v1058, %v1004
        %v1060 = vadd.f32 %v1059, %v1006
        %v1061 = vadd.f32 %v1060, %v1008
        %v1062 = vadd.f32 %v1061, %v1010
        %v1063 = vadd.f32 %v1062, %v1012
        %v1064 = vadd.f32 %v1063, %v1014
        %v1065 = vadd.f32 %v1064, %v1016
        %v1066 = vadd.f32 %v1065, %v1018
        %v1067 = vadd.f32 %v1066, %v1020
        %v1068 = vrot.slane %v1067, 4
        %v1069 = vadd.f32 %v1067, %v1068
        %v1070 = vrot.slane %v1069, 2
        %v1071 = vadd.f32 %v1069, %v1070
        %v1072 = vrot.slane %v1071, 1
        %v1073 = vadd.f32 %v1071, %v1072
        %v1074 = vadd.f32 %v1022, %v1024
        %v1075 = vadd.f32 %v1074, %v1026
        %v1076 = vadd.f32 %v1075, %v1028
        %v1077 = vadd.f32 %v1076, %v1030
        %v1078 = vadd.f32 %v1077, %v1032
        %v1079 = vadd.f32 %v1078, %v1034
        %v1080 = vadd.f32 %v1079, %v1036
        %v1081 = vadd.f32 %v1080, %v1038
        %v1082 = vadd.f32 %v1081, %v1040
        %v1083 = vadd.f32 %v1082, %v1042
        %v1084 = vadd.f32 %v1083, %v1044
        %v1085 = vadd.f32 %v1084, %v1046
        %v1086 = vadd.f32 %v1085, %v1048
        %v1087 = vadd.f32 %v1086, %v1050
        %v1088 = vadd.f32 %v1087, %v1052
        %v1089 = vrot.slane %v1088, 4
        %v1090 = vadd.f32 %v1088, %v1089
        %v1091 = vrot.slane %v1090, 2
        %v1092 = vadd.f32 %v1090, %v1091
        %v1093 = vrot.slane %v1092, 1
        %v1094 = vadd.f32 %v1092, %v1093
        %v1095 = vld [vmem:[%s255] sm:$0xff]
        %v1096 = vld [vmem:[%s255 + $0x8] sm:$0xff]
        %1097 = vmatprep.subr.mxu0 0.0
        %1098 = vmatpush1.msra.mxu0 %v990
        %1099 = vmatprep.subr.mxu0 0.0
        %1100 = vmatpush1.msra.mxu0 %v992
        %1101 = vmatprep.subr.mxu0 0.0
        %1102 = vmatpush1.msra.mxu0 %v994
        %1103 = vmatprep.subr.mxu0 0.0
        %1104 = vmatpush1.msra.mxu0 %v996
        %1105 = vmatprep.subr.mxu0 0.0
        %1106 = vmatpush1.msra.mxu0 %v998
        %1107 = vmatprep.subr.mxu0 0.0
        %1108 = vmatpush1.msra.mxu0 %v1000
        %1109 = vmatprep.subr.mxu0 0.0
        %1110 = vmatpush1.msra.mxu0 %v1002
        %1111 = vmatprep.subr.mxu0 0.0
        %1112 = vmatpush1.msra.mxu0 %v1004
        %1113 = vmatprep.subr.mxu0 0.0
        %1114 = vmatpush1.msra.mxu0 %v1006
        %1115 = vmatprep.subr.mxu0 0.0
        %1116 = vmatpush1.msra.mxu0 %v1008
        %1117 = vmatprep.subr.mxu0 0.0
        %1118 = vmatpush1.msra.mxu0 %v1010
        %1119 = vmatprep.subr.mxu0 0.0
        %1120 = vmatpush1.msra.mxu0 %v1012
        %1121 = vmatprep.subr.mxu0 0.0
        %1122 = vmatpush1.msra.mxu0 %v1014
        %1123 = vmatprep.subr.mxu0 0.0
        %1124 = vmatpush1.msra.mxu0 %v1016
        %1125 = vmatprep.subr.mxu0 0.0
        %1126 = vmatpush1.msra.mxu0 %v1018
        %1127 = vmatprep.subr.mxu0 0.0
        %1128 = vmatpush1.msra.mxu0 %v1020
        %1129 = vmatprep.subr.mxu0 0.0
        %1130 = vmatpush1.msra.mxu0 0.0
        %1131 = vmatprep.subr.mxu0 0.0
        %1132 = vmatpush1.msra.mxu0 0.0
        %1133 = vmatprep.subr.mxu0 0.0
        %1134 = vmatpush1.msra.mxu0 0.0
        %1135 = vmatprep.subr.mxu0 0.0
        %1136 = vmatpush1.msra.mxu0 0.0
        %1137 = vmatprep.subr.mxu0 0.0
        %1138 = vmatpush1.msra.mxu0 0.0
        %1139 = vmatprep.subr.mxu0 0.0
        %1140 = vmatpush1.msra.mxu0 0.0
        %1141 = vmatprep.subr.mxu0 0.0
        %1142 = vmatpush1.msra.mxu0 0.0
        %1143 = vmatprep.subr.mxu0 0.0
        %1144 = vmatpush1.msra.mxu0 0.0
        %1145 = vmatprep.subr.mxu0 0.0
        %1146 = vmatpush1.msra.mxu0 0.0
        %1147 = vmatprep.subr.mxu0 0.0
        %1148 = vmatpush1.msra.mxu0 0.0
        %1149 = vmatprep.subr.mxu0 0.0
        %1150 = vmatpush1.msra.mxu0 0.0
        %1151 = vmatprep.subr.mxu0 0.0
        %1152 = vmatpush1.msra.mxu0 0.0
        %1153 = vmatprep.subr.mxu0 0.0
        %1154 = vmatpush1.msra.mxu0 0.0
        %1155 = vmatprep.subr.mxu0 0.0
        %1156 = vmatpush1.msra.mxu0 0.0
        %1157 = vmatprep.subr.mxu0 0.0
        %1158 = vmatpush1.msra.mxu0 0.0
        %1159 = vmatprep.subr.mxu0 0.0
        %1160 = vmatpush1.msra.mxu0 0.0
        %1161 = vmatprep.mubr.f32.mxu0 0.0
        %1162 = vmatmul.mubr.f32.gmra.mrb[0].mxu0 %v1095
        %v1163 = vpop.f32.mrb[0].mxu0
        %v1164 = vadd.f32 0.0, %v1163
        %v1165 = vpop.f32.mrb[0].mxu0
        %1166 = vdwg.mxu0
        %1167 = vmatprep.subr.mxu0 0.0
        %1168 = vmatpush1.msra.mxu0 %v1022
        %1169 = vmatprep.subr.mxu0 0.0
        %1170 = vmatpush1.msra.mxu0 %v1024
        %1171 = vmatprep.subr.mxu0 0.0
        %1172 = vmatpush1.msra.mxu0 %v1026
        %1173 = vmatprep.subr.mxu0 0.0
        %1174 = vmatpush1.msra.mxu0 %v1028
        %1175 = vmatprep.subr.mxu0 0.0
        %1176 = vmatpush1.msra.mxu0 %v1030
        %1177 = vmatprep.subr.mxu0 0.0
        %1178 = vmatpush1.msra.mxu0 %v1032
        %1179 = vmatprep.subr.mxu0 0.0
        %1180 = vmatpush1.msra.mxu0 %v1034
        %1181 = vmatprep.subr.mxu0 0.0
        %1182 = vmatpush1.msra.mxu0 %v1036
        %1183 = vmatprep.subr.mxu0 0.0
        %1184 = vmatpush1.msra.mxu0 %v1038
        %1185 = vmatprep.subr.mxu0 0.0
        %1186 = vmatpush1.msra.mxu0 %v1040
        %1187 = vmatprep.subr.mxu0 0.0
        %1188 = vmatpush1.msra.mxu0 %v1042
        %1189 = vmatprep.subr.mxu0 0.0
        %1190 = vmatpush1.msra.mxu0 %v1044
        %1191 = vmatprep.subr.mxu0 0.0
        %1192 = vmatpush1.msra.mxu0 %v1046
        %1193 = vmatprep.subr.mxu0 0.0
        %1194 = vmatpush1.msra.mxu0 %v1048
        %1195 = vmatprep.subr.mxu0 0.0
        %1196 = vmatpush1.msra.mxu0 %v1050
        %1197 = vmatprep.subr.mxu0 0.0
        %1198 = vmatpush1.msra.mxu0 %v1052
        %1199 = vmatprep.subr.mxu0 0.0
        %1200 = vmatpush1.msra.mxu0 0.0
        %1201 = vmatprep.subr.mxu0 0.0
        %1202 = vmatpush1.msra.mxu0 0.0
        %1203 = vmatprep.subr.mxu0 0.0
        %1204 = vmatpush1.msra.mxu0 0.0
        %1205 = vmatprep.subr.mxu0 0.0
        %1206 = vmatpush1.msra.mxu0 0.0
        %1207 = vmatprep.subr.mxu0 0.0
        %1208 = vmatpush1.msra.mxu0 0.0
        %1209 = vmatprep.subr.mxu0 0.0
        %1210 = vmatpush1.msra.mxu0 0.0
        %1211 = vmatprep.subr.mxu0 0.0
        %1212 = vmatpush1.msra.mxu0 0.0
        %1213 = vmatprep.subr.mxu0 0.0
        %1214 = vmatpush1.msra.mxu0 0.0
        %1215 = vmatprep.subr.mxu0 0.0
        %1216 = vmatpush1.msra.mxu0 0.0
        %1217 = vmatprep.subr.mxu0 0.0
        %1218 = vmatpush1.msra.mxu0 0.0
        %1219 = vmatprep.subr.mxu0 0.0
        %1220 = vmatpush1.msra.mxu0 0.0
        %1221 = vmatprep.subr.mxu0 0.0
        %1222 = vmatpush1.msra.mxu0 0.0
        %1223 = vmatprep.subr.mxu0 0.0
        %1224 = vmatpush1.msra.mxu0 0.0
        %1225 = vmatprep.subr.mxu0 0.0
        %1226 = vmatpush1.msra.mxu0 0.0
        %1227 = vmatprep.subr.mxu0 0.0
        %1228 = vmatpush1.msra.mxu0 0.0
        %1229 = vmatprep.subr.mxu0 0.0
        %1230 = vmatpush1.msra.mxu0 0.0
        %1231 = vmatprep.mubr.f32.mxu0 0.0
        %1232 = vmatmul.mubr.f32.gmra.mrb[0].mxu0 %v1096
        %v1233 = vpop.f32.mrb[0].mxu0
        %v1234 = vadd.f32 0.0, %v1233
        %v1235 = vpop.f32.mrb[0].mxu0
        %1236 = vdwg.mxu0
        %v1237 = vrcp.pop %v1073
        %v1238 = vmul.f32 %v1164, %v1237
        %v1239 = vrcp.pop %v1094
        %v1240 = vmul.f32 %v1234, %v1239
        %1241 = vst [vmem:[%s287] sm:$0xff] %v1238
        %1242 = vst [vmem:[%s287 + $0x8] sm:$0xff] %v1240
        %s1243 = sand.u32 %s125, 1
        %s1244 = scalar_lea.sflag [#allocation5], %s1243
        %s1245 = sand.u32 %s125, 1
        %s1246 = smul.addr %s1245, 16
        %s1247 = scalar_lea.vmem [#allocation9], %s1246
        // Predicated region
        $region49: #{tpu_custom_call.1} parent=31 // pred_check
          %p1248 = pneg %p135
        $region50: #{tpu_custom_call.1} parent=31 // pred_check_branch
          %1250 = sbr.rel (%p1248) target = $region52
        $region51: #{tpu_custom_call.1} parent=31 // pred_region
          %s1251 = smul.u32 2, %s27
          %s1253 = ssub.s32 256, 256
          %1254 = vsyncadd %s1244, %s1253
          %s1255 = sadd.s32 %s28, %s1251
          %s1256 = smul.addr %s1255, 128
          %s1257 = scalar_lea.hbm %s3, %s1256
          %s1258 = sshll.u32 %s1247, 4
          %s1259 = int_to_ptr.vmem [resolvable:$true] %s1258
          %1264 = dma.vmem_to_hbm [thread:$0]  %s1259, 256, %s1257, %s1244, 128, 128, 8
        $region52: #{tpu_custom_call.1} parent=31 // pred_fallthru
          _
      $region32: #{tpu_custom_call.1} parent=5 // pred_fallthru
        _
      %p1265 = scmp.le.s32.totalorder 2, %s18
      // Predicated region
      $region53: #{tpu_custom_call.1} parent=5 // pred_check
        %p1266 = pneg %p1265
      $region54: #{tpu_custom_call.1} parent=5 // pred_check_branch
        %1268 = sbr.rel (%p1266) target = $region56
      $region55: #{tpu_custom_call.1} parent=5 // pred_region
        %s1269 = ssub.s32 %s18, 2
        // Predicated region
        $region57: #{tpu_custom_call.1} parent=55 // pred_check
          %p1270 = pneg %p141
        $region58: #{tpu_custom_call.1} parent=55 // pred_check_branch
          %1272 = sbr.rel (%p1270) target = $region60
        $region59: #{tpu_custom_call.1} parent=55 // pred_region
          %s1273 = sand.u32 %s126, 1
          %s1274 = scalar_lea.sflag [#allocation5], %s1273
          %s1275 = sand.u32 %s126, 1
          %s1276 = smul.addr %s1275, 16
          %s1277 = scalar_lea.vmem [#allocation9], %s1276
          %1278 = dma.done %s1274, 256
        $region60: #{tpu_custom_call.1} parent=55 // pred_fallthru
          _
      $region56: #{tpu_custom_call.1} parent=5 // pred_fallthru
        _
    $region6: #{tpu_custom_call.1} parent=1 // loop_footer
      %s22 = sadd.s32 1, %s18
    $region7: #{tpu_custom_call.1} parent=1 // loop_footer_branch
      %17 = sbr.rel target = $region3
    $region8: #{tpu_custom_call.1} parent=1 // loop_exit
      _
    %1279 = vsyncpa [#allocation4], 1
    %s1280 = scalar_lea.sflag [#allocation4], 1
    %1281 = vsyncpa %s1280, 1
    %1282 = vsyncpa [#allocation7], 1
    %s1283 = scalar_lea.sflag [#allocation7], 1
    %1284 = vsyncpa %s1283, 1
    %1285 = vsyncpa [#allocation5], 1
    %s1286 = scalar_lea.sflag [#allocation5], 1
    %1287 = vsyncpa %s1286, 1

</llo_original>
